<compile_context>
chip_gen: v5e
topology: v5e:2x2
jax: 0.10.0
libtpu: 0.0.40
codegen_flags: <defaults>
</compile_context>

<pallas_src>
import jax
import jax.numpy as jnp
import numpy as np
from jax.experimental import pallas as pl
from jax.experimental.pallas import tpu as pltpu


def _drop_path_kernel(scale_ref, x_ref, o_ref):
    # scale_ref: (bt, 1) f32 per-sample scale (0 or 1/keep_prob)
    # x_ref/o_ref: (bt, L) tile of the flattened input/output
    o_ref[...] = x_ref[...] * scale_ref[...].astype(x_ref.dtype)


def drop_path_pallas(x, *, drop_prob=0.0, training=False, key=None):
    """Pallas TPU implementation of DropPath.forward."""
    if drop_prob == 0.0 or not training:
        return x  # identity, matching the PyTorch early return
    keep_prob = 1.0 - drop_prob
    if key is None:
        key = jax.random.PRNGKey(0)

    orig_shape = x.shape
    B = orig_shape[0]
    L = int(np.prod(orig_shape[1:])) if x.ndim > 1 else 1
    x2 = x.reshape(B, L)

    # Per-sample Bernoulli(keep_prob) mask with 1/keep_prob folded in (B, 1) f32.
    u = jax.random.uniform(key, (B, 1), dtype=jnp.float32)
    scale = jnp.floor(keep_prob + u) * (1.0 / keep_prob)

    # Fuse multiple samples per grid step into a large lane-dense block
    # (~8 MiB per buffer => 4 live double-buffered buffers ~32 MiB, fits v7x).
    itemsize = jnp.dtype(x.dtype).itemsize
    row_bytes = max(L * itemsize, 1)
    target_block_bytes = 8 * 1024 * 1024
    if B * row_bytes <= target_block_bytes:
        bt = B                                    # whole batch in one block
    else:
        bt = max(8, (target_block_bytes // row_bytes) // 8 * 8)
    grid = (pl.cdiv(B, bt),)

    out2 = pl.pallas_call(
        _drop_path_kernel,
        out_shape=jax.ShapeDtypeStruct((B, L), x.dtype),
        grid_spec=pltpu.PrefetchScalarGridSpec(
            num_scalar_prefetch=0,
            grid=grid,
            in_specs=[
                pl.BlockSpec((bt, 1), lambda i: (i, 0)),   # per-sample scale
                pl.BlockSpec((bt, L), lambda i: (i, 0)),   # x tile
            ],
            out_specs=pl.BlockSpec((bt, L), lambda i: (i, 0)),
        ),
        compiler_params=pltpu.CompilerParams(
            dimension_semantics=("parallel",),
            vmem_limit_bytes=48 * 1024 * 1024,
        ),
    )(scale, x2)
    return out2.reshape(orig_shape)


if __name__ == "__main__":
    key = jax.random.PRNGKey(0)
    x_key, mask_key = jax.random.split(key)

    # Small ViT-token-like shape (B, N, C).
    B, N, C = 2, 8, 128
    x = jax.random.normal(x_key, (B, N, C), dtype=jnp.float32)

    drop_prob = 0.5
    keep_prob = 1.0 - drop_prob

    # Training / nonzero drop_prob path (the kernel).
    out = drop_path_pallas(x, drop_prob=drop_prob, training=True, key=mask_key)
    out = jax.block_until_ready(out)

    # Eval path: identity (matches PyTorch early return).
    out_eval = drop_path_pallas(x, drop_prob=drop_prob, training=False)
    out_eval = jax.block_until_ready(out_eval)

    # Sanity checks: each sample is either all-zero or exactly x / keep_prob.
    x_np, out_np = np.asarray(x), np.asarray(out)
    for b in range(B):
        kept = np.allclose(out_np[b], x_np[b] / keep_prob, rtol=1e-5, atol=1e-5)
        dropped = np.allclose(out_np[b], 0.0)
        assert kept or dropped, f"sample {b}: invalid drop-path output"
    assert np.array_equal(np.asarray(out_eval), x_np), "eval path must be identity"

    print("KERNEL_OK")
</pallas_src>

<mosaic_0001>
module attributes {stable_mosaic.version = 11 : i64} {
  func.func @_drop_path_kernel(%arg0: i32, %arg1: memref<2x1xf32, #tpu.memory_space<vmem>>, %arg2: memref<2x1024xf32, #tpu.memory_space<vmem>>, %arg3: memref<2x1024xf32, #tpu.memory_space<vmem>>) attributes {dimension_semantics = [#tpu.dimension_semantics<parallel>], iteration_bounds = array<i64: 1>, scalar_prefetch = 0 : i64, scratch_operands = 0 : i64, tpu.core_type = #tpu.core_type<tc>, window_params = [{transform_indices = @transform_0, window_bounds = array<i64: 2, 1>}, {transform_indices = @transform_1, window_bounds = array<i64: 2, 1024>}, {transform_indices = @transform_2, window_bounds = array<i64: 2, 1024>}]} {
    %c0 = arith.constant 0 : index
    %c0_0 = arith.constant 0 : index
    %0 = vector.load %arg2[%c0, %c0_0] : memref<2x1024xf32, #tpu.memory_space<vmem>>, vector<2x1024xf32>
    %c0_1 = arith.constant 0 : index
    %c0_2 = arith.constant 0 : index
    %1 = vector.load %arg1[%c0_1, %c0_2] : memref<2x1xf32, #tpu.memory_space<vmem>>, vector<2x1xf32>
    %2 = vector.broadcast %1 : vector<2x1xf32> to vector<2x1024xf32>
    %3 = arith.mulf %0, %2 : vector<2x1024xf32>
    %c0_3 = arith.constant 0 : index
    %c0_4 = arith.constant 0 : index
    %4 = vector.load %arg3[%c0_3, %c0_4] : memref<2x1024xf32, #tpu.memory_space<vmem>>, vector<2x1024xf32>
    tpu.vector_store %arg3[%c0_3, %c0_4], %3 {strides = array<i32>} : memref<2x1024xf32, #tpu.memory_space<vmem>>, vector<2x1024xf32>,
    return
  }
  func.func @transform_0(%arg0: i32) -> (i32, i32) {
    %c0_i32 = arith.constant 0 : i32
    %c0_i32_0 = arith.constant 0 : i32
    return %arg0, %c0_i32 : i32, i32
  }
  func.func @transform_1(%arg0: i32) -> (i32, i32) {
    %c0_i32 = arith.constant 0 : i32
    %c0_i32_0 = arith.constant 0 : i32
    return %arg0, %c0_i32 : i32, i32
  }
  func.func @transform_2(%arg0: i32) -> (i32, i32) {
    %c0_i32 = arith.constant 0 : i32
    %c0_i32_0 = arith.constant 0 : i32
    return %arg0, %c0_i32 : i32, i32
  }
}

</mosaic_0001>

<llo_original>
// kernel: tpu_custom_call.1
$region0: #{tpu_custom_call.1}
  #allocation0 [shape = 'u32[]', space=smem, size = 0x4, offset = 0x4, fixed_abs, tag = 'smem constant byte address 0x4 - core index']
  #allocation1 [shape = 'u32[72,128]{1,0:T(1,128)}', space=vmem, size = 0x9000, scoped, tag = 'internal scratch']
  %s0 = inlined_call_operand.vmem [shape: f32[2,1], index: 0, kind: input, shape index: {}]
  %s1 = inlined_call_operand.hbm [shape: f32[2,1024], index: 1, kind: input, shape index: {}]
  %s2 = inlined_call_operand.hbm [shape: f32[2,1024], index: 2, kind: output, shape index: {}]
  %s3 = sld [smem:[#allocation0]]
  $region22: #{tpu_custom_call.1} parent=0
    _
  %s5 = ssub.s32 1, %s3
  %s6 = scalar_select 0, %s5, %s3
  $region1: #{tpu_custom_call.1} parent=0
    #allocation2 [shape = 'u8[8192]{0}', space=vmem, size = 0x2000, scoped, tag = 'input window, operand 1, single buffered']
    #allocation3 [shape = 's32[1]{0}', space=sflag, size = 0x4, scoped, tag = 'scoped memory for tpu_custom_call.1']
    #allocation4 [shape = 's32[1]{0}', space=sflag, size = 0x4, scoped, tag = 'scoped memory for tpu_custom_call.1']
    #allocation5 [shape = 'u8[8192]{0}', space=vmem, size = 0x2000, scoped, tag = 'output window, operand 0, single buffered']
    %7 = vsyncpa [#allocation3], 0
    %8 = vsyncpa [#allocation4], 0
    // Predicated region
    $region2: #{tpu_custom_call.1} parent=1 // pred_check
      _
    $region3: #{tpu_custom_call.1} parent=1 // pred_check_branch
      %10 = sbr.rel (0) target = $region5
    $region4: #{tpu_custom_call.1} parent=1 // pred_region
      _
    $region5: #{tpu_custom_call.1} parent=1 // pred_fallthru
      _
    // Predicated region
    $region6: #{tpu_custom_call.1} parent=1 // pred_check
      _
    $region7: #{tpu_custom_call.1} parent=1 // pred_check_branch
      %12 = sbr.rel (0) target = $region9
    $region8: #{tpu_custom_call.1} parent=1 // pred_region
      %14 = vsyncadd [#allocation3], 0
      %s16 = sshll.u32 %s1, 4
      %s17 = int_to_ptr.hbm [resolvable:$true] %s16
      %s18 = sshll.u32 [#allocation2], 4
      %s19 = int_to_ptr.vmem [resolvable:$true] %s18
      %21 = dma.hbm_to_vmem [thread:$0]  %s17, 256, %s19, [#allocation3]
    $region9: #{tpu_custom_call.1} parent=1 // pred_fallthru
      _
    // Predicated region
    $region10: #{tpu_custom_call.1} parent=1 // pred_check
      _
    $region11: #{tpu_custom_call.1} parent=1 // pred_check_branch
      %23 = sbr.rel (0) target = $region13
    $region12: #{tpu_custom_call.1} parent=1 // pred_region
      %25 = dma.done [#allocation3], 256
    $region13: #{tpu_custom_call.1} parent=1 // pred_fallthru
      _
    %v26 = vld [vmem:[#allocation2] sm:$0xff]
    %v27 = vld [vmem:[#allocation2 + $0x8] sm:$0xff]
    %v28 = vld [vmem:[%s0] sm:$0x3]
    %30 = vset.pattern.permute.xlu0 0
    %31 = vperm.xlu0 %30, %v28
    %v32 = vpop.permute.xlu0 %31
    %v34 = vunpack.c.l.s4 269488144
    %v35 = vunpack.c.0.s8 %v34
    %v36 = vperm.slane %v32, %v35
    %v38 = vmul.f32 %v26, %v36
    %v39 = vmul.f32 %v27, %v36
    %40 = vst [vmem:[#allocation5] sm:$0xff] %v38
    %41 = vst [vmem:[#allocation5 + $0x8] sm:$0xff] %v39
    // Predicated region
    $region14: #{tpu_custom_call.1} parent=1 // pred_check
      _
    $region15: #{tpu_custom_call.1} parent=1 // pred_check_branch
      %43 = sbr.rel (0) target = $region17
    $region16: #{tpu_custom_call.1} parent=1 // pred_region
      %45 = vsyncadd [#allocation4], 0
      %s47 = sshll.u32 [#allocation5], 4
      %s48 = int_to_ptr.vmem [resolvable:$true] %s47
      %s49 = sshll.u32 %s2, 4
      %s50 = int_to_ptr.hbm [resolvable:$true] %s49
      %52 = dma.vmem_to_hbm [thread:$0]  %s48, 256, %s50, [#allocation4]
    $region17: #{tpu_custom_call.1} parent=1 // pred_fallthru
      _
    // Predicated region
    $region18: #{tpu_custom_call.1} parent=1 // pred_check
      _
    $region19: #{tpu_custom_call.1} parent=1 // pred_check_branch
      %54 = sbr.rel (0) target = $region21
    $region20: #{tpu_custom_call.1} parent=1 // pred_region
      %56 = dma.done [#allocation4], 256
    $region21: #{tpu_custom_call.1} parent=1 // pred_fallthru
      _
    %57 = vsyncpa [#allocation3], 1
    %58 = vsyncpa [#allocation4], 1

</llo_original>
